<compile_context>
chip_gen: v7x
topology: tpu7x:2x2x1
jax: 0.10.0
libtpu: 0.0.40
codegen_flags: <defaults>
</compile_context>

<pallas_src>
import jax
import jax.numpy as jnp
from jax.experimental import pallas as pl
from jax.experimental.pallas import tpu as pltpu


def _round_up(x, m):
    return (x + m - 1) // m * m


def _triplet_mlp_kernel(x1_ref, x2_ref, x3_ref,
                        w1_ref, b1_ref, w2_ref, b2_ref,
                        o1_ref, o2_ref, o3_ref):
    # x*_ref:  (TM, D)   f32   flattened input row tile
    # w1_ref:  (D, H1)   bf16  first linear weight (shared, VMEM-resident)
    # b1_ref:  (1, H1)   f32
    # w2_ref:  (H1, EP)  bf16  second linear weight, E zero-padded to EP=128
    # b2_ref:  (1, EP)   f32
    # o*_ref:  (TM, EP)  f32   lane-dense embedding tile
    w1 = w1_ref[...]
    b1 = b1_ref[...]
    w2 = w2_ref[...]
    b2 = b2_ref[...]

    def embed(x_ref, o_ref):
        # bf16 at the MXU boundary, f32 accumulation + f32 epilogue.
        x = x_ref[...].astype(jnp.bfloat16)
        h = jnp.dot(x, w1, preferred_element_type=jnp.float32) + b1
        h = jnp.maximum(h, 0.0)                                   # ReLU (f32)
        o = jnp.dot(h.astype(jnp.bfloat16), w2,
                    preferred_element_type=jnp.float32) + b2
        o_ref[...] = o.astype(o_ref.dtype)

    embed(x1_ref, o1_ref)
    embed(x2_ref, o2_ref)
    embed(x3_ref, o3_ref)


def triplet_embeddings_pallas(x1f, x2f, x3f, w1, b1, w2, b2):
    """Shared-weight embedding MLP on three (B, D) flattened inputs."""
    B, D = x1f.shape
    H1 = w1.shape[1]
    E = w2.shape[1]

    # Row tile: multiple of 8; big enough to pipeline, small enough for VMEM
    # (3 inputs x 2 buffers x TM*D*4B must fit comfortably on v7x too).
    Bp8 = _round_up(B, 8)
    TM = Bp8 if Bp8 <= 512 else 256
    Bp = _round_up(B, TM)

    # Lane-dense output width: pad E (=16) up to a multiple of 128 so stores
    # are full, unmasked 128-lane vregs.
    EP = _round_up(max(E, 128), 128)

    def pad_rows(x):
        return x if Bp == B else jnp.pad(x, ((0, Bp - B), (0, 0)))

    x1p, x2p, x3p = pad_rows(x1f), pad_rows(x2f), pad_rows(x3f)

    # One-time weight prep (tiny): bf16 for the MXU, lane-padded second layer,
    # f32 biases for the f32 epilogue.
    w1b = w1.astype(jnp.bfloat16)
    w2b = jnp.zeros((H1, EP), jnp.bfloat16).at[:, :E].set(w2.astype(jnp.bfloat16))
    b1f = b1.astype(jnp.float32).reshape(1, H1)
    b2f = jnp.zeros((1, EP), jnp.float32).at[:, :E].set(
        b2.astype(jnp.float32).reshape(1, E))

    grid = (Bp // TM,)
    x_spec = pl.BlockSpec((TM, D), lambda i: (i, 0))
    const2 = lambda i: (0, 0)          # weights/biases: fetched once, stay in VMEM
    out_spec = pl.BlockSpec((TM, EP), lambda i: (i, 0))

    o1, o2, o3 = pl.pallas_call(
        _triplet_mlp_kernel,
        out_shape=[
            jax.ShapeDtypeStruct((Bp, EP), jnp.float32),
            jax.ShapeDtypeStruct((Bp, EP), jnp.float32),
            jax.ShapeDtypeStruct((Bp, EP), jnp.float32),
        ],
        grid_spec=pltpu.PrefetchScalarGridSpec(
            num_scalar_prefetch=0,
            grid=grid,
            in_specs=[
                x_spec, x_spec, x_spec,
                pl.BlockSpec((D, H1), const2),
                pl.BlockSpec((1, H1), const2),
                pl.BlockSpec((H1, EP), const2),
                pl.BlockSpec((1, EP), const2),
            ],
            out_specs=[out_spec, out_spec, out_spec],
        ),
        compiler_params=pltpu.CompilerParams(
            dimension_semantics=("parallel",),   # shard row tiles across TCs (v7x)
        ),
    )(x1p, x2p, x3p, w1b, b1f, w2b, b2f)

    return o1[:B, :E], o2[:B, :E], o3[:B, :E]


def triplet_net_forward(x1, x2, x3, params):
    """TripletNet.forward: apply the shared embedding net to x1, x2, x3.

    x1, x2, x3: (B, C, H, W) float32 arrays (NCHW, like PyTorch).
    Returns (out1, out2, out3), each (B, E) float32.
    """
    w1, b1, w2, b2 = params
    B = x1.shape[0]
    # Flatten NCHW -> (B, C*H*W) row-major, matching torch.flatten / nn.Linear.
    x1f = x1.reshape(B, -1)
    x2f = x2.reshape(B, -1)
    x3f = x3.reshape(B, -1)
    return triplet_embeddings_pallas(x1f, x2f, x3f, w1, b1, w2, b2)


def init_params(key, in_features, hidden, emb_dim):
    k1, k2, k3, k4 = jax.random.split(key, 4)
    # Deterministic small-scale init (synthetic weights, not a checkpoint).
    w1 = jax.random.normal(k1, (in_features, hidden), jnp.float32) * 0.02
    b1 = jax.random.normal(k2, (1, hidden), jnp.float32) * 0.01
    w2 = jax.random.normal(k3, (hidden, emb_dim), jnp.float32) * 0.02
    b2 = jax.random.normal(k4, (1, emb_dim), jnp.float32) * 0.01
    return w1, b1, w2, b2


if __name__ == "__main__":
    B, C, H, W = 2, 4, 16, 16
    HIDDEN, EMB = 32, 16
    D = C * H * W

    key = jax.random.PRNGKey(0)
    kx1, kx2, kx3, kp = jax.random.split(key, 4)
    x1 = jax.random.normal(kx1, (B, C, H, W), jnp.float32)
    x2 = jax.random.normal(kx2, (B, C, H, W), jnp.float32)
    x3 = jax.random.normal(kx3, (B, C, H, W), jnp.float32)
    params = init_params(kp, D, HIDDEN, EMB)

    out1, out2, out3 = jax.jit(triplet_net_forward)(x1, x2, x3, params)
    jax.block_until_ready((out1, out2, out3))

    # Reference check in plain f32 JAX (same math; tolerance loosened because
    # the kernel feeds the MXU bf16 with f32 accumulation).
    def ref_embed(x):
        w1, b1, w2, b2 = params
        h = jnp.maximum(x.reshape(B, -1) @ w1 + b1, 0.0)
        return h @ w2 + b2

    r1, r2, r3 = ref_embed(x1), ref_embed(x2), ref_embed(x3)
    assert out1.shape == (B, EMB) and out2.shape == (B, EMB) and out3.shape == (B, EMB)
    assert jnp.allclose(out1, r1, atol=1e-2, rtol=1e-2)
    assert jnp.allclose(out2, r2, atol=1e-2, rtol=1e-2)
    assert jnp.allclose(out3, r3, atol=1e-2, rtol=1e-2)

    print("KERNEL_OK")
</pallas_src>

<mosaic_0001>
module attributes {stable_mosaic.version = 11 : i64} {
  func.func @_triplet_mlp_kernel(%arg0: i32, %arg1: memref<8x1024xf32, #tpu.memory_space<vmem>>, %arg2: memref<8x1024xf32, #tpu.memory_space<vmem>>, %arg3: memref<8x1024xf32, #tpu.memory_space<vmem>>, %arg4: memref<1024x32xbf16, #tpu.memory_space<vmem>>, %arg5: memref<1x32xf32, #tpu.memory_space<vmem>>, %arg6: memref<32x128xbf16, #tpu.memory_space<vmem>>, %arg7: memref<1x128xf32, #tpu.memory_space<vmem>>, %arg8: memref<8x128xf32, #tpu.memory_space<vmem>>, %arg9: memref<8x128xf32, #tpu.memory_space<vmem>>, %arg10: memref<8x128xf32, #tpu.memory_space<vmem>>) attributes {dimension_semantics = [#tpu.dimension_semantics<parallel>], iteration_bounds = array<i64: 1>, scalar_prefetch = 0 : i64, scratch_operands = 0 : i64, tpu.core_type = #tpu.core_type<tc>, window_params = [{transform_indices = @transform_0, window_bounds = array<i64: 8, 1024>}, {transform_indices = @transform_1, window_bounds = array<i64: 8, 1024>}, {transform_indices = @transform_2, window_bounds = array<i64: 8, 1024>}, {pipeline_mode = #tpu.pipeline_mode<synchronous>, transform_indices = @transform_3, window_bounds = array<i64: 1024, 32>}, {pipeline_mode = #tpu.pipeline_mode<synchronous>, transform_indices = @transform_4, window_bounds = array<i64: 1, 32>}, {pipeline_mode = #tpu.pipeline_mode<synchronous>, transform_indices = @transform_5, window_bounds = array<i64: 32, 128>}, {pipeline_mode = #tpu.pipeline_mode<synchronous>, transform_indices = @transform_6, window_bounds = array<i64: 1, 128>}, {transform_indices = @transform_7, window_bounds = array<i64: 8, 128>}, {transform_indices = @transform_8, window_bounds = array<i64: 8, 128>}, {transform_indices = @transform_9, window_bounds = array<i64: 8, 128>}]} {
    %c0 = arith.constant 0 : index
    %c0_0 = arith.constant 0 : index
    %0 = vector.load %arg4[%c0, %c0_0] : memref<1024x32xbf16, #tpu.memory_space<vmem>>, vector<1024x32xbf16>
    %c0_1 = arith.constant 0 : index
    %c0_2 = arith.constant 0 : index
    %1 = vector.load %arg5[%c0_1, %c0_2] : memref<1x32xf32, #tpu.memory_space<vmem>>, vector<1x32xf32>
    %c0_3 = arith.constant 0 : index
    %c0_4 = arith.constant 0 : index
    %2 = vector.load %arg6[%c0_3, %c0_4] : memref<32x128xbf16, #tpu.memory_space<vmem>>, vector<32x128xbf16>
    %c0_5 = arith.constant 0 : index
    %c0_6 = arith.constant 0 : index
    %3 = vector.load %arg7[%c0_5, %c0_6] : memref<1x128xf32, #tpu.memory_space<vmem>>, vector<1x128xf32>
    %c0_7 = arith.constant 0 : index
    %c0_8 = arith.constant 0 : index
    %4 = vector.load %arg1[%c0_7, %c0_8] : memref<8x1024xf32, #tpu.memory_space<vmem>>, vector<8x1024xf32>
    %5 = arith.truncf %4 : vector<8x1024xf32> to vector<8x1024xbf16>
    %cst = arith.constant dense<0.000000e+00> : vector<8x32xf32>
    %6 = tpu.matmul %5, %0, %cst {dimension_numbers = #tpu.dot_dimension_numbers<[1], [0], [0], [1], [0, 0, 1, 1], [], []>} : vector<8x1024xbf16>, vector<1024x32xbf16>, vector<8x32xf32> -> vector<8x32xf32>
    %7 = vector.broadcast %1 : vector<1x32xf32> to vector<8x32xf32>
    %8 = arith.addf %6, %7 : vector<8x32xf32>
    %cst_9 = arith.constant 0.000000e+00 : f32
    %9 = vector.broadcast %cst_9 : f32 to vector<8x32xf32>
    %10 = arith.maximumf %8, %9 : vector<8x32xf32>
    %11 = arith.truncf %10 : vector<8x32xf32> to vector<8x32xbf16>
    %cst_10 = arith.constant dense<0.000000e+00> : vector<8x128xf32>
    %12 = tpu.matmul %11, %2, %cst_10 {dimension_numbers = #tpu.dot_dimension_numbers<[1], [0], [0], [1], [0, 0, 1, 1], [], []>} : vector<8x32xbf16>, vector<32x128xbf16>, vector<8x128xf32> -> vector<8x128xf32>
    %13 = vector.broadcast %3 : vector<1x128xf32> to vector<8x128xf32>
    %14 = arith.addf %12, %13 : vector<8x128xf32>
    %c0_11 = arith.constant 0 : index
    %c0_12 = arith.constant 0 : index
    %15 = vector.load %arg8[%c0_11, %c0_12] : memref<8x128xf32, #tpu.memory_space<vmem>>, vector<8x128xf32>
    tpu.vector_store %arg8[%c0_11, %c0_12], %14 {strides = array<i32>} : memref<8x128xf32, #tpu.memory_space<vmem>>, vector<8x128xf32>,
    %c0_13 = arith.constant 0 : index
    %c0_14 = arith.constant 0 : index
    %16 = vector.load %arg2[%c0_13, %c0_14] : memref<8x1024xf32, #tpu.memory_space<vmem>>, vector<8x1024xf32>
    %17 = arith.truncf %16 : vector<8x1024xf32> to vector<8x1024xbf16>
    %cst_15 = arith.constant dense<0.000000e+00> : vector<8x32xf32>
    %18 = tpu.matmul %17, %0, %cst_15 {dimension_numbers = #tpu.dot_dimension_numbers<[1], [0], [0], [1], [0, 0, 1, 1], [], []>} : vector<8x1024xbf16>, vector<1024x32xbf16>, vector<8x32xf32> -> vector<8x32xf32>
    %19 = vector.broadcast %1 : vector<1x32xf32> to vector<8x32xf32>
    %20 = arith.addf %18, %19 : vector<8x32xf32>
    %cst_16 = arith.constant 0.000000e+00 : f32
    %21 = vector.broadcast %cst_16 : f32 to vector<8x32xf32>
    %22 = arith.maximumf %20, %21 : vector<8x32xf32>
    %23 = arith.truncf %22 : vector<8x32xf32> to vector<8x32xbf16>
    %cst_17 = arith.constant dense<0.000000e+00> : vector<8x128xf32>
    %24 = tpu.matmul %23, %2, %cst_17 {dimension_numbers = #tpu.dot_dimension_numbers<[1], [0], [0], [1], [0, 0, 1, 1], [], []>} : vector<8x32xbf16>, vector<32x128xbf16>, vector<8x128xf32> -> vector<8x128xf32>
    %25 = vector.broadcast %3 : vector<1x128xf32> to vector<8x128xf32>
    %26 = arith.addf %24, %25 : vector<8x128xf32>
    %c0_18 = arith.constant 0 : index
    %c0_19 = arith.constant 0 : index
    %27 = vector.load %arg9[%c0_18, %c0_19] : memref<8x128xf32, #tpu.memory_space<vmem>>, vector<8x128xf32>
    tpu.vector_store %arg9[%c0_18, %c0_19], %26 {strides = array<i32>} : memref<8x128xf32, #tpu.memory_space<vmem>>, vector<8x128xf32>,
    %c0_20 = arith.constant 0 : index
    %c0_21 = arith.constant 0 : index
    %28 = vector.load %arg3[%c0_20, %c0_21] : memref<8x1024xf32, #tpu.memory_space<vmem>>, vector<8x1024xf32>
    %29 = arith.truncf %28 : vector<8x1024xf32> to vector<8x1024xbf16>
    %cst_22 = arith.constant dense<0.000000e+00> : vector<8x32xf32>
    %30 = tpu.matmul %29, %0, %cst_22 {dimension_numbers = #tpu.dot_dimension_numbers<[1], [0], [0], [1], [0, 0, 1, 1], [], []>} : vector<8x1024xbf16>, vector<1024x32xbf16>, vector<8x32xf32> -> vector<8x32xf32>
    %31 = vector.broadcast %1 : vector<1x32xf32> to vector<8x32xf32>
    %32 = arith.addf %30, %31 : vector<8x32xf32>
    %cst_23 = arith.constant 0.000000e+00 : f32
    %33 = vector.broadcast %cst_23 : f32 to vector<8x32xf32>
    %34 = arith.maximumf %32, %33 : vector<8x32xf32>
    %35 = arith.truncf %34 : vector<8x32xf32> to vector<8x32xbf16>
    %cst_24 = arith.constant dense<0.000000e+00> : vector<8x128xf32>
    %36 = tpu.matmul %35, %2, %cst_24 {dimension_numbers = #tpu.dot_dimension_numbers<[1], [0], [0], [1], [0, 0, 1, 1], [], []>} : vector<8x32xbf16>, vector<32x128xbf16>, vector<8x128xf32> -> vector<8x128xf32>
    %37 = vector.broadcast %3 : vector<1x128xf32> to vector<8x128xf32>
    %38 = arith.addf %36, %37 : vector<8x128xf32>
    %c0_25 = arith.constant 0 : index
    %c0_26 = arith.constant 0 : index
    %39 = vector.load %arg10[%c0_25, %c0_26] : memref<8x128xf32, #tpu.memory_space<vmem>>, vector<8x128xf32>
    tpu.vector_store %arg10[%c0_25, %c0_26], %38 {strides = array<i32>} : memref<8x128xf32, #tpu.memory_space<vmem>>, vector<8x128xf32>,
    return
  }
  func.func @transform_0(%arg0: i32) -> (i32, i32) {
    %c0_i32 = arith.constant 0 : i32
    %c0_i32_0 = arith.constant 0 : i32
    return %arg0, %c0_i32 : i32, i32
  }
  func.func @transform_1(%arg0: i32) -> (i32, i32) {
    %c0_i32 = arith.constant 0 : i32
    %c0_i32_0 = arith.constant 0 : i32
    return %arg0, %c0_i32 : i32, i32
  }
  func.func @transform_2(%arg0: i32) -> (i32, i32) {
    %c0_i32 = arith.constant 0 : i32
    %c0_i32_0 = arith.constant 0 : i32
    return %arg0, %c0_i32 : i32, i32
  }
  func.func @transform_3(%arg0: i32) -> (i32, i32) {
    %c0_i32 = arith.constant 0 : i32
    %c0_i32_0 = arith.constant 0 : i32
    %c0_i32_1 = arith.constant 0 : i32
    return %c0_i32, %c0_i32_0 : i32, i32
  }
  func.func @transform_4(%arg0: i32) -> (i32, i32) {
    %c0_i32 = arith.constant 0 : i32
    %c0_i32_0 = arith.constant 0 : i32
    %c0_i32_1 = arith.constant 0 : i32
    return %c0_i32, %c0_i32_0 : i32, i32
  }
  func.func @transform_5(%arg0: i32) -> (i32, i32) {
    %c0_i32 = arith.constant 0 : i32
    %c0_i32_0 = arith.constant 0 : i32
    %c0_i32_1 = arith.constant 0 : i32
    return %c0_i32, %c0_i32_0 : i32, i32
  }
  func.func @transform_6(%arg0: i32) -> (i32, i32) {
    %c0_i32 = arith.constant 0 : i32
    %c0_i32_0 = arith.constant 0 : i32
    %c0_i32_1 = arith.constant 0 : i32
    return %c0_i32, %c0_i32_0 : i32, i32
  }
  func.func @transform_7(%arg0: i32) -> (i32, i32) {
    %c0_i32 = arith.constant 0 : i32
    %c0_i32_0 = arith.constant 0 : i32
    return %arg0, %c0_i32 : i32, i32
  }
  func.func @transform_8(%arg0: i32) -> (i32, i32) {
    %c0_i32 = arith.constant 0 : i32
    %c0_i32_0 = arith.constant 0 : i32
    return %arg0, %c0_i32 : i32, i32
  }
  func.func @transform_9(%arg0: i32) -> (i32, i32) {
    %c0_i32 = arith.constant 0 : i32
    %c0_i32_0 = arith.constant 0 : i32
    return %arg0, %c0_i32 : i32, i32
  }
}

</mosaic_0001>

<llo_original>
// kernel: triplet_net_forward.1
$region0: #{triplet_net_forward.1}
  #allocation0 [shape = 'u32[]', space=smem, size = 0x4, offset = 0x4, fixed_abs, tag = 'smem constant byte address 0x4 - core index']
  #allocation1 [shape = 'u32[144,128]{1,0:T(1,128)}', space=vmem, size = 0x12000, scoped, tag = 'internal scratch']
  %s0 = inlined_call_operand.vmem [shape: f32[8,1024], index: 0, kind: input, shape index: {}]
  %s1 = inlined_call_operand.vmem [shape: f32[8,1024], index: 1, kind: input, shape index: {}]
  %s2 = inlined_call_operand.vmem [shape: f32[8,1024], index: 2, kind: input, shape index: {}]
  %s3 = inlined_call_operand.vmem [shape: bf16[1024,32], index: 3, kind: input, shape index: {}]
  %s4 = inlined_call_operand.vmem [shape: f32[1,32], index: 4, kind: input, shape index: {}]
  %s5 = inlined_call_operand.vmem [shape: bf16[32,128], index: 5, kind: input, shape index: {}]
  %s6 = inlined_call_operand.vmem [shape: f32[1,128], index: 6, kind: input, shape index: {}]
  %s7 = inlined_call_operand.vmem [shape: f32[8,128], index: 7, kind: output, shape index: {0}]
  %s8 = inlined_call_operand.vmem [shape: f32[8,128], index: 8, kind: output, shape index: {1}]
  %s9 = inlined_call_operand.vmem [shape: f32[8,128], index: 9, kind: output, shape index: {2}]
  %10 = xla_tuple %s7, %s8, %s9
  %s11 = sld [smem:[#allocation0]]
  $region54: #{triplet_net_forward.1} parent=0
    _
  %s13 = ssub.s32 1, %s11
  %s14 = scalar_select 0, %s13, %s11
  // Predicated region
  $region2: #{triplet_net_forward.1} parent=0 // pred_check
    _
  $region3: #{triplet_net_forward.1} parent=0 // pred_check_branch
    %16 = sbr.rel (0) target = $region5
  $region4: #{triplet_net_forward.1} parent=0 // pred_region
    _
  $region5: #{triplet_net_forward.1} parent=0 // pred_fallthru
    _
  // Predicated region
  $region6: #{triplet_net_forward.1} parent=0 // pred_check
    _
  $region7: #{triplet_net_forward.1} parent=0 // pred_check_branch
    %18 = sbr.rel (0) target = $region9
  $region8: #{triplet_net_forward.1} parent=0 // pred_region
    _
  $region9: #{triplet_net_forward.1} parent=0 // pred_fallthru
    _
  // Predicated region
  $region10: #{triplet_net_forward.1} parent=0 // pred_check
    _
  $region11: #{triplet_net_forward.1} parent=0 // pred_check_branch
    %20 = sbr.rel (0) target = $region13
  $region12: #{triplet_net_forward.1} parent=0 // pred_region
    _
  $region13: #{triplet_net_forward.1} parent=0 // pred_fallthru
    _
  // Predicated region
  $region14: #{triplet_net_forward.1} parent=0 // pred_check
    _
  $region15: #{triplet_net_forward.1} parent=0 // pred_check_branch
    %22 = sbr.rel (0) target = $region17
  $region16: #{triplet_net_forward.1} parent=0 // pred_region
    _
  $region17: #{triplet_net_forward.1} parent=0 // pred_fallthru
    _
  // Predicated region
  $region18: #{triplet_net_forward.1} parent=0 // pred_check
    _
  $region19: #{triplet_net_forward.1} parent=0 // pred_check_branch
    %24 = sbr.rel (0) target = $region21
  $region20: #{triplet_net_forward.1} parent=0 // pred_region
    _
  $region21: #{triplet_net_forward.1} parent=0 // pred_fallthru
    _
  // Predicated region
  $region22: #{triplet_net_forward.1} parent=0 // pred_check
    _
  $region23: #{triplet_net_forward.1} parent=0 // pred_check_branch
    %26 = sbr.rel (0) target = $region25
  $region24: #{triplet_net_forward.1} parent=0 // pred_region
    _
  $region25: #{triplet_net_forward.1} parent=0 // pred_fallthru
    _
  // Predicated region
  $region26: #{triplet_net_forward.1} parent=0 // pred_check
    _
  $region27: #{triplet_net_forward.1} parent=0 // pred_check_branch
    %28 = sbr.rel (0) target = $region29
  $region28: #{triplet_net_forward.1} parent=0 // pred_region
    _
  $region29: #{triplet_net_forward.1} parent=0 // pred_fallthru
    _
  %v30 = vld [vmem:[%s3] sm:$0xf]
  %v31 = vld [vmem:[%s3 + $0x4] sm:$0xf]
  %v32 = vld [vmem:[%s3 + $0x8] sm:$0xf]
  %v33 = vld [vmem:[%s3 + $0xc] sm:$0xf]
  %v34 = vld [vmem:[%s3 + $0x10] sm:$0xf]
  %v35 = vld [vmem:[%s3 + $0x14] sm:$0xf]
  %v36 = vld [vmem:[%s3 + $0x18] sm:$0xf]
  %v37 = vld [vmem:[%s3 + $0x1c] sm:$0xf]
  %v38 = vld [vmem:[%s3 + $0x20] sm:$0xf]
  %v39 = vld [vmem:[%s3 + $0x24] sm:$0xf]
  %v40 = vld [vmem:[%s3 + $0x28] sm:$0xf]
  %v41 = vld [vmem:[%s3 + $0x2c] sm:$0xf]
  %v42 = vld [vmem:[%s3 + $0x30] sm:$0xf]
  %v43 = vld [vmem:[%s3 + $0x34] sm:$0xf]
  %v44 = vld [vmem:[%s3 + $0x38] sm:$0xf]
  %v45 = vld [vmem:[%s3 + $0x3c] sm:$0xf]
  %v46 = vld [vmem:[%s3 + $0x40] sm:$0xf]
  %v47 = vld [vmem:[%s3 + $0x44] sm:$0xf]
  %v48 = vld [vmem:[%s3 + $0x48] sm:$0xf]
  %v49 = vld [vmem:[%s3 + $0x4c] sm:$0xf]
  %v50 = vld [vmem:[%s3 + $0x50] sm:$0xf]
  %v51 = vld [vmem:[%s3 + $0x54] sm:$0xf]
  %v52 = vld [vmem:[%s3 + $0x58] sm:$0xf]
  %v53 = vld [vmem:[%s3 + $0x5c] sm:$0xf]
  %v54 = vld [vmem:[%s3 + $0x60] sm:$0xf]
  %v55 = vld [vmem:[%s3 + $0x64] sm:$0xf]
  %v56 = vld [vmem:[%s3 + $0x68] sm:$0xf]
  %v57 = vld [vmem:[%s3 + $0x6c] sm:$0xf]
  %v58 = vld [vmem:[%s3 + $0x70] sm:$0xf]
  %v59 = vld [vmem:[%s3 + $0x74] sm:$0xf]
  %v60 = vld [vmem:[%s3 + $0x78] sm:$0xf]
  %v61 = vld [vmem:[%s3 + $0x7c] sm:$0xf]
  %v62 = vld [vmem:[%s3 + $0x80] sm:$0xf]
  %v63 = vld [vmem:[%s3 + $0x84] sm:$0xf]
  %v64 = vld [vmem:[%s3 + $0x88] sm:$0xf]
  %v65 = vld [vmem:[%s3 + $0x8c] sm:$0xf]
  %v66 = vld [vmem:[%s3 + $0x90] sm:$0xf]
  %v67 = vld [vmem:[%s3 + $0x94] sm:$0xf]
  %v68 = vld [vmem:[%s3 + $0x98] sm:$0xf]
  %v69 = vld [vmem:[%s3 + $0x9c] sm:$0xf]
  %v70 = vld [vmem:[%s3 + $0xa0] sm:$0xf]
  %v71 = vld [vmem:[%s3 + $0xa4] sm:$0xf]
  %v72 = vld [vmem:[%s3 + $0xa8] sm:$0xf]
  %v73 = vld [vmem:[%s3 + $0xac] sm:$0xf]
  %v74 = vld [vmem:[%s3 + $0xb0] sm:$0xf]
  %v75 = vld [vmem:[%s3 + $0xb4] sm:$0xf]
  %v76 = vld [vmem:[%s3 + $0xb8] sm:$0xf]
  %v77 = vld [vmem:[%s3 + $0xbc] sm:$0xf]
  %v78 = vld [vmem:[%s3 + $0xc0] sm:$0xf]
  %v79 = vld [vmem:[%s3 + $0xc4] sm:$0xf]
  %v80 = vld [vmem:[%s3 + $0xc8] sm:$0xf]
  %v81 = vld [vmem:[%s3 + $0xcc] sm:$0xf]
  %v82 = vld [vmem:[%s3 + $0xd0] sm:$0xf]
  %v83 = vld [vmem:[%s3 + $0xd4] sm:$0xf]
  %v84 = vld [vmem:[%s3 + $0xd8] sm:$0xf]
  %v85 = vld [vmem:[%s3 + $0xdc] sm:$0xf]
  %v86 = vld [vmem:[%s3 + $0xe0] sm:$0xf]
  %v87 = vld [vmem:[%s3 + $0xe4] sm:$0xf]
  %v88 = vld [vmem:[%s3 + $0xe8] sm:$0xf]
  %v89 = vld [vmem:[%s3 + $0xec] sm:$0xf]
  %v90 = vld [vmem:[%s3 + $0xf0] sm:$0xf]
  %v91 = vld [vmem:[%s3 + $0xf4] sm:$0xf]
  %v92 = vld [vmem:[%s3 + $0xf8] sm:$0xf]
  %v93 = vld [vmem:[%s3 + $0xfc] sm:$0xf]
  %v94 = vld [vmem:[%s3 + $0x100] sm:$0xf]
  %v95 = vld [vmem:[%s3 + $0x104] sm:$0xf]
  %v96 = vld [vmem:[%s3 + $0x108] sm:$0xf]
  %v97 = vld [vmem:[%s3 + $0x10c] sm:$0xf]
  %v98 = vld [vmem:[%s3 + $0x110] sm:$0xf]
  %v99 = vld [vmem:[%s3 + $0x114] sm:$0xf]
  %v100 = vld [vmem:[%s3 + $0x118] sm:$0xf]
  %v101 = vld [vmem:[%s3 + $0x11c] sm:$0xf]
  %v102 = vld [vmem:[%s3 + $0x120] sm:$0xf]
  %v103 = vld [vmem:[%s3 + $0x124] sm:$0xf]
  %v104 = vld [vmem:[%s3 + $0x128] sm:$0xf]
  %v105 = vld [vmem:[%s3 + $0x12c] sm:$0xf]
  %v106 = vld [vmem:[%s3 + $0x130] sm:$0xf]
  %v107 = vld [vmem:[%s3 + $0x134] sm:$0xf]
  %v108 = vld [vmem:[%s3 + $0x138] sm:$0xf]
  %v109 = vld [vmem:[%s3 + $0x13c] sm:$0xf]
  %v110 = vld [vmem:[%s3 + $0x140] sm:$0xf]
  %v111 = vld [vmem:[%s3 + $0x144] sm:$0xf]
  %v112 = vld [vmem:[%s3 + $0x148] sm:$0xf]
  %v113 = vld [vmem:[%s3 + $0x14c] sm:$0xf]
  %v114 = vld [vmem:[%s3 + $0x150] sm:$0xf]
  %v115 = vld [vmem:[%s3 + $0x154] sm:$0xf]
  %v116 = vld [vmem:[%s3 + $0x158] sm:$0xf]
  %v117 = vld [vmem:[%s3 + $0x15c] sm:$0xf]
  %v118 = vld [vmem:[%s3 + $0x160] sm:$0xf]
  %v119 = vld [vmem:[%s3 + $0x164] sm:$0xf]
  %v120 = vld [vmem:[%s3 + $0x168] sm:$0xf]
  %v121 = vld [vmem:[%s3 + $0x16c] sm:$0xf]
  %v122 = vld [vmem:[%s3 + $0x170] sm:$0xf]
  %v123 = vld [vmem:[%s3 + $0x174] sm:$0xf]
  %v124 = vld [vmem:[%s3 + $0x178] sm:$0xf]
  %v125 = vld [vmem:[%s3 + $0x17c] sm:$0xf]
  %v126 = vld [vmem:[%s3 + $0x180] sm:$0xf]
  %v127 = vld [vmem:[%s3 + $0x184] sm:$0xf]
  %v128 = vld [vmem:[%s3 + $0x188] sm:$0xf]
  %v129 = vld [vmem:[%s3 + $0x18c] sm:$0xf]
  %v130 = vld [vmem:[%s3 + $0x190] sm:$0xf]
  %v131 = vld [vmem:[%s3 + $0x194] sm:$0xf]
  %v132 = vld [vmem:[%s3 + $0x198] sm:$0xf]
  %v133 = vld [vmem:[%s3 + $0x19c] sm:$0xf]
  %v134 = vld [vmem:[%s3 + $0x1a0] sm:$0xf]
  %v135 = vld [vmem:[%s3 + $0x1a4] sm:$0xf]
  %v136 = vld [vmem:[%s3 + $0x1a8] sm:$0xf]
  %v137 = vld [vmem:[%s3 + $0x1ac] sm:$0xf]
  %v138 = vld [vmem:[%s3 + $0x1b0] sm:$0xf]
  %v139 = vld [vmem:[%s3 + $0x1b4] sm:$0xf]
  %v140 = vld [vmem:[%s3 + $0x1b8] sm:$0xf]
  %v141 = vld [vmem:[%s3 + $0x1bc] sm:$0xf]
  %v142 = vld [vmem:[%s3 + $0x1c0] sm:$0xf]
  %v143 = vld [vmem:[%s3 + $0x1c4] sm:$0xf]
  %v144 = vld [vmem:[%s3 + $0x1c8] sm:$0xf]
  %v145 = vld [vmem:[%s3 + $0x1cc] sm:$0xf]
  %v146 = vld [vmem:[%s3 + $0x1d0] sm:$0xf]
  %v147 = vld [vmem:[%s3 + $0x1d4] sm:$0xf]
  %v148 = vld [vmem:[%s3 + $0x1d8] sm:$0xf]
  %v149 = vld [vmem:[%s3 + $0x1dc] sm:$0xf]
  %v150 = vld [vmem:[%s3 + $0x1e0] sm:$0xf]
  %v151 = vld [vmem:[%s3 + $0x1e4] sm:$0xf]
  %v152 = vld [vmem:[%s3 + $0x1e8] sm:$0xf]
  %v153 = vld [vmem:[%s3 + $0x1ec] sm:$0xf]
  %v154 = vld [vmem:[%s3 + $0x1f0] sm:$0xf]
  %v155 = vld [vmem:[%s3 + $0x1f4] sm:$0xf]
  %v156 = vld [vmem:[%s3 + $0x1f8] sm:$0xf]
  %v157 = vld [vmem:[%s3 + $0x1fc] sm:$0xf]
  %v158 = vld [vmem:[%s4] sm:$0x1]
  %v159 = vld [vmem:[%s5] sm:$0xf]
  %v160 = vld [vmem:[%s5 + $0x4] sm:$0xf]
  %v161 = vld [vmem:[%s5 + $0x8] sm:$0xf]
  %v162 = vld [vmem:[%s5 + $0xc] sm:$0xf]
  %v163 = vld [vmem:[%s6] sm:$0x1]
  %v164 = vld [vmem:[%s0] sm:$0xff]
  %v165 = vld [vmem:[%s0 + $0x8] sm:$0xff]
  %v166 = vld [vmem:[%s0 + $0x10] sm:$0xff]
  %v167 = vld [vmem:[%s0 + $0x18] sm:$0xff]
  %v168 = vld [vmem:[%s0 + $0x20] sm:$0xff]
  %v169 = vld [vmem:[%s0 + $0x28] sm:$0xff]
  %v170 = vld [vmem:[%s0 + $0x30] sm:$0xff]
  %v171 = vld [vmem:[%s0 + $0x38] sm:$0xff]
  %v172 = vpack.c.bf16 %v164, %v164
  %v173 = vpack.c.bf16 %v165, %v165
  %v174 = vpack.c.bf16 %v166, %v166
  %v175 = vpack.c.bf16 %v167, %v167
  %v176 = vpack.c.bf16 %v168, %v168
  %v177 = vpack.c.bf16 %v169, %v169
  %v178 = vpack.c.bf16 %v170, %v170
  %v179 = vpack.c.bf16 %v171, %v171
  %v181 = vlaneseq
  %v182 = vshrl.u32 %v181, 7
  %v183 = vsub.s32 0, %v182
  %v184 = vrot.slane %v158, %v183
  %v314 = vunpack.c.l.b16 %v30
  %v315 = vunpack.c.l.b16 %v31
  %v316 = vunpack.c.l.b16 %v32
  %v317 = vunpack.c.l.b16 %v33
  %v318 = vunpack.c.l.b16 %v34
  %v319 = vunpack.c.l.b16 %v35
  %v320 = vunpack.c.l.b16 %v36
  %v321 = vunpack.c.l.b16 %v37
  %v322 = vunpack.c.l.b16 %v38
  %v323 = vunpack.c.l.b16 %v39
  %v324 = vunpack.c.l.b16 %v40
  %v325 = vunpack.c.l.b16 %v41
  %v326 = vunpack.c.l.b16 %v42
  %v327 = vunpack.c.l.b16 %v43
  %v328 = vunpack.c.l.b16 %v44
  %v329 = vunpack.c.l.b16 %v45
  %v330 = vunpack.c.l.b16 %v46
  %v331 = vunpack.c.l.b16 %v47
  %v332 = vunpack.c.l.b16 %v48
  %v333 = vunpack.c.l.b16 %v49
  %v334 = vunpack.c.l.b16 %v50
  %v335 = vunpack.c.l.b16 %v51
  %v336 = vunpack.c.l.b16 %v52
  %v337 = vunpack.c.l.b16 %v53
  %v338 = vunpack.c.l.b16 %v54
  %v339 = vunpack.c.l.b16 %v55
  %v340 = vunpack.c.l.b16 %v56
  %v341 = vunpack.c.l.b16 %v57
  %v342 = vunpack.c.l.b16 %v58
  %v343 = vunpack.c.l.b16 %v59
  %v344 = vunpack.c.l.b16 %v60
  %v345 = vunpack.c.l.b16 %v61
  %v346 = vunpack.c.l.b16 %v62
  %v347 = vunpack.c.l.b16 %v63
  %v348 = vunpack.c.l.b16 %v64
  %v349 = vunpack.c.l.b16 %v65
  %v350 = vunpack.c.l.b16 %v66
  %v351 = vunpack.c.l.b16 %v67
  %v352 = vunpack.c.l.b16 %v68
  %v353 = vunpack.c.l.b16 %v69
  %v354 = vunpack.c.l.b16 %v70
  %v355 = vunpack.c.l.b16 %v71
  %v356 = vunpack.c.l.b16 %v72
  %v357 = vunpack.c.l.b16 %v73
  %v358 = vunpack.c.l.b16 %v74
  %v359 = vunpack.c.l.b16 %v75
  %v360 = vunpack.c.l.b16 %v76
  %v361 = vunpack.c.l.b16 %v77
  %v362 = vunpack.c.l.b16 %v78
  %v363 = vunpack.c.l.b16 %v79
  %v364 = vunpack.c.l.b16 %v80
  %v365 = vunpack.c.l.b16 %v81
  %v366 = vunpack.c.l.b16 %v82
  %v367 = vunpack.c.l.b16 %v83
  %v368 = vunpack.c.l.b16 %v84
  %v369 = vunpack.c.l.b16 %v85
  %v370 = vunpack.c.l.b16 %v86
  %v371 = vunpack.c.l.b16 %v87
  %v372 = vunpack.c.l.b16 %v88
  %v373 = vunpack.c.l.b16 %v89
  %v374 = vunpack.c.l.b16 %v90
  %v375 = vunpack.c.l.b16 %v91
  %v376 = vunpack.c.l.b16 %v92
  %v377 = vunpack.c.l.b16 %v93
  %v378 = vunpack.c.l.b16 %v94
  %v379 = vunpack.c.l.b16 %v95
  %v380 = vunpack.c.l.b16 %v96
  %v381 = vunpack.c.l.b16 %v97
  %v382 = vunpack.c.l.b16 %v98
  %v383 = vunpack.c.l.b16 %v99
  %v384 = vunpack.c.l.b16 %v100
  %v385 = vunpack.c.l.b16 %v101
  %v386 = vunpack.c.l.b16 %v102
  %v387 = vunpack.c.l.b16 %v103
  %v388 = vunpack.c.l.b16 %v104
  %v389 = vunpack.c.l.b16 %v105
  %v390 = vunpack.c.l.b16 %v106
  %v391 = vunpack.c.l.b16 %v107
  %v392 = vunpack.c.l.b16 %v108
  %v393 = vunpack.c.l.b16 %v109
  %v394 = vunpack.c.l.b16 %v110
  %v395 = vunpack.c.l.b16 %v111
  %v396 = vunpack.c.l.b16 %v112
  %v397 = vunpack.c.l.b16 %v113
  %v398 = vunpack.c.l.b16 %v114
  %v399 = vunpack.c.l.b16 %v115
  %v400 = vunpack.c.l.b16 %v116
  %v401 = vunpack.c.l.b16 %v117
  %v402 = vunpack.c.l.b16 %v118
  %v403 = vunpack.c.l.b16 %v119
  %v404 = vunpack.c.l.b16 %v120
  %v405 = vunpack.c.l.b16 %v121
  %v406 = vunpack.c.l.b16 %v122
  %v407 = vunpack.c.l.b16 %v123
  %v408 = vunpack.c.l.b16 %v124
  %v409 = vunpack.c.l.b16 %v125
  %v410 = vunpack.c.l.b16 %v126
  %v411 = vunpack.c.l.b16 %v127
  %v412 = vunpack.c.l.b16 %v128
  %v413 = vunpack.c.l.b16 %v129
  %v414 = vunpack.c.l.b16 %v130
  %v415 = vunpack.c.l.b16 %v131
  %v416 = vunpack.c.l.b16 %v132
  %v417 = vunpack.c.l.b16 %v133
  %v418 = vunpack.c.l.b16 %v134
  %v419 = vunpack.c.l.b16 %v135
  %v420 = vunpack.c.l.b16 %v136
  %v421 = vunpack.c.l.b16 %v137
  %v422 = vunpack.c.l.b16 %v138
  %v423 = vunpack.c.l.b16 %v139
  %v424 = vunpack.c.l.b16 %v140
  %v425 = vunpack.c.l.b16 %v141
  %v426 = vunpack.c.l.b16 %v142
  %v427 = vunpack.c.l.b16 %v143
  %v428 = vunpack.c.l.b16 %v144
  %v429 = vunpack.c.l.b16 %v145
  %v430 = vunpack.c.l.b16 %v146
  %v431 = vunpack.c.l.b16 %v147
  %v432 = vunpack.c.l.b16 %v148
  %v433 = vunpack.c.l.b16 %v149
  %v434 = vunpack.c.l.b16 %v150
  %v435 = vunpack.c.l.b16 %v151
  %v436 = vunpack.c.l.b16 %v152
  %v437 = vunpack.c.l.b16 %v153
  %v438 = vunpack.c.l.b16 %v154
  %v439 = vunpack.c.l.b16 %v155
  %v440 = vunpack.c.l.b16 %v156
  %v441 = vunpack.c.l.b16 %v157
  %v442 = vpack.c.b16 %v315, %v314
  %v443 = vpack.c.b16 %v317, %v316
  %v444 = vpack.c.b16 %v319, %v318
  %v445 = vpack.c.b16 %v321, %v320
  %v446 = vpack.c.b16 %v323, %v322
  %v447 = vpack.c.b16 %v325, %v324
  %v448 = vpack.c.b16 %v327, %v326
  %v449 = vpack.c.b16 %v329, %v328
  %v450 = vpack.c.b16 %v331, %v330
  %v451 = vpack.c.b16 %v333, %v332
  %v452 = vpack.c.b16 %v335, %v334
  %v453 = vpack.c.b16 %v337, %v336
  %v454 = vpack.c.b16 %v339, %v338
  %v455 = vpack.c.b16 %v341, %v340
  %v456 = vpack.c.b16 %v343, %v342
  %v457 = vpack.c.b16 %v345, %v344
  %v458 = vpack.c.b16 %v347, %v346
  %v459 = vpack.c.b16 %v349, %v348
  %v460 = vpack.c.b16 %v351, %v350
  %v461 = vpack.c.b16 %v353, %v352
  %v462 = vpack.c.b16 %v355, %v354
  %v463 = vpack.c.b16 %v357, %v356
  %v464 = vpack.c.b16 %v359, %v358
  %v465 = vpack.c.b16 %v361, %v360
  %v466 = vpack.c.b16 %v363, %v362
  %v467 = vpack.c.b16 %v365, %v364
  %v468 = vpack.c.b16 %v367, %v366
  %v469 = vpack.c.b16 %v369, %v368
  %v470 = vpack.c.b16 %v371, %v370
  %v471 = vpack.c.b16 %v373, %v372
  %v472 = vpack.c.b16 %v375, %v374
  %v473 = vpack.c.b16 %v377, %v376
  %v474 = vpack.c.b16 %v379, %v378
  %v475 = vpack.c.b16 %v381, %v380
  %v476 = vpack.c.b16 %v383, %v382
  %v477 = vpack.c.b16 %v385, %v384
  %v478 = vpack.c.b16 %v387, %v386
  %v479 = vpack.c.b16 %v389, %v388
  %v480 = vpack.c.b16 %v391, %v390
  %v481 = vpack.c.b16 %v393, %v392
  %v482 = vpack.c.b16 %v395, %v394
  %v483 = vpack.c.b16 %v397, %v396
  %v484 = vpack.c.b16 %v399, %v398
  %v485 = vpack.c.b16 %v401, %v400
  %v486 = vpack.c.b16 %v403, %v402
  %v487 = vpack.c.b16 %v405, %v404
  %v488 = vpack.c.b16 %v407, %v406
  %v489 = vpack.c.b16 %v409, %v408
  %v490 = vpack.c.b16 %v411, %v410
  %v491 = vpack.c.b16 %v413, %v412
  %v492 = vpack.c.b16 %v415, %v414
  %v493 = vpack.c.b16 %v417, %v416
  %v494 = vpack.c.b16 %v419, %v418
  %v495 = vpack.c.b16 %v421, %v420
  %v496 = vpack.c.b16 %v423, %v422
  %v497 = vpack.c.b16 %v425, %v424
  %v498 = vpack.c.b16 %v427, %v426
  %v499 = vpack.c.b16 %v429, %v428
  %v500 = vpack.c.b16 %v431, %v430
  %v501 = vpack.c.b16 %v433, %v432
  %v502 = vpack.c.b16 %v435, %v434
  %v503 = vpack.c.b16 %v437, %v436
  %v504 = vpack.c.b16 %v439, %v438
  %v505 = vpack.c.b16 %v441, %v440
  %570 = vmatprep.subr.bf16.mxu0 0
  %571 = vmatpush1.bf16.msra.mxu0 %v442
  %572 = vmatprep.subr.bf16.mxu0 0
  %573 = vmatpush1.bf16.msra.mxu0 %v443
  %574 = vmatprep.subr.bf16.mxu0 0
  %575 = vmatpush1.bf16.msra.mxu0 %v444
  %576 = vmatprep.subr.bf16.mxu0 0
  %577 = vmatpush1.bf16.msra.mxu0 %v445
  %578 = vmatprep.subr.bf16.mxu0 0
  %579 = vmatpush1.bf16.msra.mxu0 %v446
  %580 = vmatprep.subr.bf16.mxu0 0
  %581 = vmatpush1.bf16.msra.mxu0 %v447
  %582 = vmatprep.subr.bf16.mxu0 0
  %583 = vmatpush1.bf16.msra.mxu0 %v448
  %584 = vmatprep.subr.bf16.mxu0 0
  %585 = vmatpush1.bf16.msra.mxu0 %v449
  %586 = vmatprep.subr.bf16.mxu0 0
  %587 = vmatpush1.bf16.msra.mxu0 %v450
  %588 = vmatprep.subr.bf16.mxu0 0
  %589 = vmatpush1.bf16.msra.mxu0 %v451
  %590 = vmatprep.subr.bf16.mxu0 0
  %591 = vmatpush1.bf16.msra.mxu0 %v452
  %592 = vmatprep.subr.bf16.mxu0 0
  %593 = vmatpush1.bf16.msra.mxu0 %v453
  %594 = vmatprep.subr.bf16.mxu0 0
  %595 = vmatpush1.bf16.msra.mxu0 %v454
  %596 = vmatprep.subr.bf16.mxu0 0
  %597 = vmatpush1.bf16.msra.mxu0 %v455
  %598 = vmatprep.subr.bf16.mxu0 0
  %599 = vmatpush1.bf16.msra.mxu0 %v456
  %600 = vmatprep.subr.bf16.mxu0 0
  %601 = vmatpush1.bf16.msra.mxu0 %v457
  %602 = vmatprep.mubr.bf16.mxu0 %v173
  %603 = vmatmul.mubr.bf16.gmra.mrb[0].mxu0 %v172
  %v604 = vpop.f32.mrb[0].mxu0
  %v605 = vadd.f32 %v184, %v604
  %v606 = vpop.f32.mrb[0].mxu0
  %v607 = vpop.f32.mrb[0].mxu0
  %v608 = vpop.f32.mrb[0].mxu0
  %609 = vdwg.mxu0
  %610 = vmatprep.subr.bf16.mxu0 0
  %611 = vmatpush1.bf16.msra.mxu0 %v458
  %612 = vmatprep.subr.bf16.mxu0 0
  %613 = vmatpush1.bf16.msra.mxu0 %v459
  %614 = vmatprep.subr.bf16.mxu0 0
  %615 = vmatpush1.bf16.msra.mxu0 %v460
  %616 = vmatprep.subr.bf16.mxu0 0
  %617 = vmatpush1.bf16.msra.mxu0 %v461
  %618 = vmatprep.subr.bf16.mxu0 0
  %619 = vmatpush1.bf16.msra.mxu0 %v462
  %620 = vmatprep.subr.bf16.mxu0 0
  %621 = vmatpush1.bf16.msra.mxu0 %v463
  %622 = vmatprep.subr.bf16.mxu0 0
  %623 = vmatpush1.bf16.msra.mxu0 %v464
  %624 = vmatprep.subr.bf16.mxu0 0
  %625 = vmatpush1.bf16.msra.mxu0 %v465
  %626 = vmatprep.subr.bf16.mxu0 0
  %627 = vmatpush1.bf16.msra.mxu0 %v466
  %628 = vmatprep.subr.bf16.mxu0 0
  %629 = vmatpush1.bf16.msra.mxu0 %v467
  %630 = vmatprep.subr.bf16.mxu0 0
  %631 = vmatpush1.bf16.msra.mxu0 %v468
  %632 = vmatprep.subr.bf16.mxu0 0
  %633 = vmatpush1.bf16.msra.mxu0 %v469
  %634 = vmatprep.subr.bf16.mxu0 0
  %635 = vmatpush1.bf16.msra.mxu0 %v470
  %636 = vmatprep.subr.bf16.mxu0 0
  %637 = vmatpush1.bf16.msra.mxu0 %v471
  %638 = vmatprep.subr.bf16.mxu0 0
  %639 = vmatpush1.bf16.msra.mxu0 %v472
  %640 = vmatprep.subr.bf16.mxu0 0
  %641 = vmatpush1.bf16.msra.mxu0 %v473
  %642 = vmatprep.mubr.bf16.mxu0 %v175
  %643 = vmatmul.mubr.bf16.gmra.mrb[0].mxu0 %v174
  %v644 = vpop.f32.mrb[0].mxu0
  %v645 = vadd.f32 %v605, %v644
  %v646 = vpop.f32.mrb[0].mxu0
  %v647 = vpop.f32.mrb[0].mxu0
  %v648 = vpop.f32.mrb[0].mxu0
  %649 = vdwg.mxu0
  %650 = vmatprep.subr.bf16.mxu0 0
  %651 = vmatpush1.bf16.msra.mxu0 %v474
  %652 = vmatprep.subr.bf16.mxu0 0
  %653 = vmatpush1.bf16.msra.mxu0 %v475
  %654 = vmatprep.subr.bf16.mxu0 0
  %655 = vmatpush1.bf16.msra.mxu0 %v476
  %656 = vmatprep.subr.bf16.mxu0 0
  %657 = vmatpush1.bf16.msra.mxu0 %v477
  %658 = vmatprep.subr.bf16.mxu0 0
  %659 = vmatpush1.bf16.msra.mxu0 %v478
  %660 = vmatprep.subr.bf16.mxu0 0
  %661 = vmatpush1.bf16.msra.mxu0 %v479
  %662 = vmatprep.subr.bf16.mxu0 0
  %663 = vmatpush1.bf16.msra.mxu0 %v480
  %664 = vmatprep.subr.bf16.mxu0 0
  %665 = vmatpush1.bf16.msra.mxu0 %v481
  %666 = vmatprep.subr.bf16.mxu0 0
  %667 = vmatpush1.bf16.msra.mxu0 %v482
  %668 = vmatprep.subr.bf16.mxu0 0
  %669 = vmatpush1.bf16.msra.mxu0 %v483
  %670 = vmatprep.subr.bf16.mxu0 0
  %671 = vmatpush1.bf16.msra.mxu0 %v484
  %672 = vmatprep.subr.bf16.mxu0 0
  %673 = vmatpush1.bf16.msra.mxu0 %v485
  %674 = vmatprep.subr.bf16.mxu0 0
  %675 = vmatpush1.bf16.msra.mxu0 %v486
  %676 = vmatprep.subr.bf16.mxu0 0
  %677 = vmatpush1.bf16.msra.mxu0 %v487
  %678 = vmatprep.subr.bf16.mxu0 0
  %679 = vmatpush1.bf16.msra.mxu0 %v488
  %680 = vmatprep.subr.bf16.mxu0 0
  %681 = vmatpush1.bf16.msra.mxu0 %v489
  %682 = vmatprep.mubr.bf16.mxu0 %v177
  %683 = vmatmul.mubr.bf16.gmra.mrb[0].mxu0 %v176
  %v684 = vpop.f32.mrb[0].mxu0
  %v685 = vadd.f32 %v645, %v684
  %v686 = vpop.f32.mrb[0].mxu0
  %v687 = vpop.f32.mrb[0].mxu0
  %v688 = vpop.f32.mrb[0].mxu0
  %689 = vdwg.mxu0
  %690 = vmatprep.subr.bf16.mxu0 0
  %691 = vmatpush1.bf16.msra.mxu0 %v490
  %692 = vmatprep.subr.bf16.mxu0 0
  %693 = vmatpush1.bf16.msra.mxu0 %v491
  %694 = vmatprep.subr.bf16.mxu0 0
  %695 = vmatpush1.bf16.msra.mxu0 %v492
  %696 = vmatprep.subr.bf16.mxu0 0
  %697 = vmatpush1.bf16.msra.mxu0 %v493
  %698 = vmatprep.subr.bf16.mxu0 0
  %699 = vmatpush1.bf16.msra.mxu0 %v494
  %700 = vmatprep.subr.bf16.mxu0 0
  %701 = vmatpush1.bf16.msra.mxu0 %v495
  %702 = vmatprep.subr.bf16.mxu0 0
  %703 = vmatpush1.bf16.msra.mxu0 %v496
  %704 = vmatprep.subr.bf16.mxu0 0
  %705 = vmatpush1.bf16.msra.mxu0 %v497
  %706 = vmatprep.subr.bf16.mxu0 0
  %707 = vmatpush1.bf16.msra.mxu0 %v498
  %708 = vmatprep.subr.bf16.mxu0 0
  %709 = vmatpush1.bf16.msra.mxu0 %v499
  %710 = vmatprep.subr.bf16.mxu0 0
  %711 = vmatpush1.bf16.msra.mxu0 %v500
  %712 = vmatprep.subr.bf16.mxu0 0
  %713 = vmatpush1.bf16.msra.mxu0 %v501
  %714 = vmatprep.subr.bf16.mxu0 0
  %715 = vmatpush1.bf16.msra.mxu0 %v502
  %716 = vmatprep.subr.bf16.mxu0 0
  %717 = vmatpush1.bf16.msra.mxu0 %v503
  %718 = vmatprep.subr.bf16.mxu0 0
  %719 = vmatpush1.bf16.msra.mxu0 %v504
  %720 = vmatprep.subr.bf16.mxu0 0
  %721 = vmatpush1.bf16.msra.mxu0 %v505
  %722 = vmatprep.mubr.bf16.mxu0 %v179
  %723 = vmatmul.mubr.bf16.gmra.mrb[0].mxu0 %v178
  %v724 = vpop.f32.mrb[0].mxu0
  %v725 = vadd.f32 %v685, %v724
  %v726 = vpop.f32.mrb[0].mxu0
  %v727 = vpop.f32.mrb[0].mxu0
  %v728 = vpop.f32.mrb[0].mxu0
  %729 = vdwg.mxu0
  %v730 = vmax.f32 %v725, 0.0
  %v731 = vpack.c.bf16 %v730, %v730
  %v733 = vlaneseq
  %v734 = vshrl.u32 %v733, 7
  %v735 = vsub.s32 0, %v734
  %v736 = vrot.slane %v163, %v735
  %v742 = vunpack.c.l.b16 %v159
  %v743 = vunpack.c.l.b16 %v160
  %v744 = vunpack.c.l.b16 %v161
  %v745 = vunpack.c.l.b16 %v162
  %v746 = vpack.c.b16 %v743, %v742
  %v747 = vpack.c.b16 %v745, %v744
  %vm750 = vcmask 261120
  %v752 = vsel %vm750, %v731, 0
  %754 = vmatprep.subr.bf16.mxu0 0
  %755 = vmatpush1.bf16.msra.mxu0 %v746
  %756 = vmatprep.subr.bf16.mxu0 0
  %757 = vmatpush1.bf16.msra.mxu0 %v747
  %758 = vmatprep.subr.bf16.mxu0 0
  %759 = vmatpush1.bf16.msra.mxu0 0
  %760 = vmatprep.subr.bf16.mxu0 0
  %761 = vmatpush1.bf16.msra.mxu0 0
  %762 = vmatprep.subr.bf16.mxu0 0
  %763 = vmatpush1.bf16.msra.mxu0 0
  %764 = vmatprep.subr.bf16.mxu0 0
  %765 = vmatpush1.bf16.msra.mxu0 0
  %766 = vmatprep.subr.bf16.mxu0 0
  %767 = vmatpush1.bf16.msra.mxu0 0
  %768 = vmatprep.subr.bf16.mxu0 0
  %769 = vmatpush1.bf16.msra.mxu0 0
  %770 = vmatprep.subr.bf16.mxu0 0
  %771 = vmatpush1.bf16.msra.mxu0 0
  %772 = vmatprep.subr.bf16.mxu0 0
  %773 = vmatpush1.bf16.msra.mxu0 0
  %774 = vmatprep.subr.bf16.mxu0 0
  %775 = vmatpush1.bf16.msra.mxu0 0
  %776 = vmatprep.subr.bf16.mxu0 0
  %777 = vmatpush1.bf16.msra.mxu0 0
  %778 = vmatprep.subr.bf16.mxu0 0
  %779 = vmatpush1.bf16.msra.mxu0 0
  %780 = vmatprep.subr.bf16.mxu0 0
  %781 = vmatpush1.bf16.msra.mxu0 0
  %782 = vmatprep.subr.bf16.mxu0 0
  %783 = vmatpush1.bf16.msra.mxu0 0
  %784 = vmatprep.subr.bf16.mxu0 0
  %785 = vmatpush1.bf16.msra.mxu0 0
  %786 = vmatprep.mubr.bf16.mxu0 0
  %787 = vmatmul.mubr.bf16.gmra.mrb[0].mxu0 %v752
  %v788 = vpop.f32.mrb[0].mxu0
  %v789 = vadd.f32 %v736, %v788
  %v790 = vpop.f32.mrb[0].mxu0
  %v791 = vpop.f32.mrb[0].mxu0
  %v792 = vpop.f32.mrb[0].mxu0
  %793 = vdwg.mxu0
  %794 = vst [vmem:[%s7] sm:$0xff] %v789
  %v795 = vld [vmem:[%s1] sm:$0xff]
  %v796 = vld [vmem:[%s1 + $0x8] sm:$0xff]
  %v797 = vld [vmem:[%s1 + $0x10] sm:$0xff]
  %v798 = vld [vmem:[%s1 + $0x18] sm:$0xff]
  %v799 = vld [vmem:[%s1 + $0x20] sm:$0xff]
  %v800 = vld [vmem:[%s1 + $0x28] sm:$0xff]
  %v801 = vld [vmem:[%s1 + $0x30] sm:$0xff]
  %v802 = vld [vmem:[%s1 + $0x38] sm:$0xff]
  %v803 = vpack.c.bf16 %v795, %v795
  %v804 = vpack.c.bf16 %v796, %v796
  %v805 = vpack.c.bf16 %v797, %v797
  %v806 = vpack.c.bf16 %v798, %v798
  %v807 = vpack.c.bf16 %v799, %v799
  %v808 = vpack.c.bf16 %v800, %v800
  %v809 = vpack.c.bf16 %v801, %v801
  %v810 = vpack.c.bf16 %v802, %v802
  %811 = vmatprep.subr.bf16.mxu0 0
  %812 = vmatpush1.bf16.msra.mxu0 %v442
  %813 = vmatprep.subr.bf16.mxu0 0
  %814 = vmatpush1.bf16.msra.mxu0 %v443
  %815 = vmatprep.subr.bf16.mxu0 0
  %816 = vmatpush1.bf16.msra.mxu0 %v444
  %817 = vmatprep.subr.bf16.mxu0 0
  %818 = vmatpush1.bf16.msra.mxu0 %v445
  %819 = vmatprep.subr.bf16.mxu0 0
  %820 = vmatpush1.bf16.msra.mxu0 %v446
  %821 = vmatprep.subr.bf16.mxu0 0
  %822 = vmatpush1.bf16.msra.mxu0 %v447
  %823 = vmatprep.subr.bf16.mxu0 0
  %824 = vmatpush1.bf16.msra.mxu0 %v448
  %825 = vmatprep.subr.bf16.mxu0 0
  %826 = vmatpush1.bf16.msra.mxu0 %v449
  %827 = vmatprep.subr.bf16.mxu0 0
  %828 = vmatpush1.bf16.msra.mxu0 %v450
  %829 = vmatprep.subr.bf16.mxu0 0
  %830 = vmatpush1.bf16.msra.mxu0 %v451
  %831 = vmatprep.subr.bf16.mxu0 0
  %832 = vmatpush1.bf16.msra.mxu0 %v452
  %833 = vmatprep.subr.bf16.mxu0 0
  %834 = vmatpush1.bf16.msra.mxu0 %v453
  %835 = vmatprep.subr.bf16.mxu0 0
  %836 = vmatpush1.bf16.msra.mxu0 %v454
  %837 = vmatprep.subr.bf16.mxu0 0
  %838 = vmatpush1.bf16.msra.mxu0 %v455
  %839 = vmatprep.subr.bf16.mxu0 0
  %840 = vmatpush1.bf16.msra.mxu0 %v456
  %841 = vmatprep.subr.bf16.mxu0 0
  %842 = vmatpush1.bf16.msra.mxu0 %v457
  %843 = vmatprep.mubr.bf16.mxu0 %v804
  %844 = vmatmul.mubr.bf16.gmra.mrb[0].mxu0 %v803
  %v845 = vpop.f32.mrb[0].mxu0
  %v846 = vadd.f32 %v184, %v845
  %v847 = vpop.f32.mrb[0].mxu0
  %v848 = vpop.f32.mrb[0].mxu0
  %v849 = vpop.f32.mrb[0].mxu0
  %850 = vdwg.mxu0
  %851 = vmatprep.subr.bf16.mxu0 0
  %852 = vmatpush1.bf16.msra.mxu0 %v458
  %853 = vmatprep.subr.bf16.mxu0 0
  %854 = vmatpush1.bf16.msra.mxu0 %v459
  %855 = vmatprep.subr.bf16.mxu0 0
  %856 = vmatpush1.bf16.msra.mxu0 %v460
  %857 = vmatprep.subr.bf16.mxu0 0
  %858 = vmatpush1.bf16.msra.mxu0 %v461
  %859 = vmatprep.subr.bf16.mxu0 0
  %860 = vmatpush1.bf16.msra.mxu0 %v462
  %861 = vmatprep.subr.bf16.mxu0 0
  %862 = vmatpush1.bf16.msra.mxu0 %v463
  %863 = vmatprep.subr.bf16.mxu0 0
  %864 = vmatpush1.bf16.msra.mxu0 %v464
  %865 = vmatprep.subr.bf16.mxu0 0
  %866 = vmatpush1.bf16.msra.mxu0 %v465
  %867 = vmatprep.subr.bf16.mxu0 0
  %868 = vmatpush1.bf16.msra.mxu0 %v466
  %869 = vmatprep.subr.bf16.mxu0 0
  %870 = vmatpush1.bf16.msra.mxu0 %v467
  %871 = vmatprep.subr.bf16.mxu0 0
  %872 = vmatpush1.bf16.msra.mxu0 %v468
  %873 = vmatprep.subr.bf16.mxu0 0
  %874 = vmatpush1.bf16.msra.mxu0 %v469
  %875 = vmatprep.subr.bf16.mxu0 0
  %876 = vmatpush1.bf16.msra.mxu0 %v470
  %877 = vmatprep.subr.bf16.mxu0 0
  %878 = vmatpush1.bf16.msra.mxu0 %v471
  %879 = vmatprep.subr.bf16.mxu0 0
  %880 = vmatpush1.bf16.msra.mxu0 %v472
  %881 = vmatprep.subr.bf16.mxu0 0
  %882 = vmatpush1.bf16.msra.mxu0 %v473
  %883 = vmatprep.mubr.bf16.mxu0 %v806
  %884 = vmatmul.mubr.bf16.gmra.mrb[0].mxu0 %v805
  %v885 = vpop.f32.mrb[0].mxu0
  %v886 = vadd.f32 %v846, %v885
  %v887 = vpop.f32.mrb[0].mxu0
  %v888 = vpop.f32.mrb[0].mxu0
  %v889 = vpop.f32.mrb[0].mxu0
  %890 = vdwg.mxu0
  %891 = vmatprep.subr.bf16.mxu0 0
  %892 = vmatpush1.bf16.msra.mxu0 %v474
  %893 = vmatprep.subr.bf16.mxu0 0
  %894 = vmatpush1.bf16.msra.mxu0 %v475
  %895 = vmatprep.subr.bf16.mxu0 0
  %896 = vmatpush1.bf16.msra.mxu0 %v476
  %897 = vmatprep.subr.bf16.mxu0 0
  %898 = vmatpush1.bf16.msra.mxu0 %v477
  %899 = vmatprep.subr.bf16.mxu0 0
  %900 = vmatpush1.bf16.msra.mxu0 %v478
  %901 = vmatprep.subr.bf16.mxu0 0
  %902 = vmatpush1.bf16.msra.mxu0 %v479
  %903 = vmatprep.subr.bf16.mxu0 0
  %904 = vmatpush1.bf16.msra.mxu0 %v480
  %905 = vmatprep.subr.bf16.mxu0 0
  %906 = vmatpush1.bf16.msra.mxu0 %v481
  %907 = vmatprep.subr.bf16.mxu0 0
  %908 = vmatpush1.bf16.msra.mxu0 %v482
  %909 = vmatprep.subr.bf16.mxu0 0
  %910 = vmatpush1.bf16.msra.mxu0 %v483
  %911 = vmatprep.subr.bf16.mxu0 0
  %912 = vmatpush1.bf16.msra.mxu0 %v484
  %913 = vmatprep.subr.bf16.mxu0 0
  %914 = vmatpush1.bf16.msra.mxu0 %v485
  %915 = vmatprep.subr.bf16.mxu0 0
  %916 = vmatpush1.bf16.msra.mxu0 %v486
  %917 = vmatprep.subr.bf16.mxu0 0
  %918 = vmatpush1.bf16.msra.mxu0 %v487
  %919 = vmatprep.subr.bf16.mxu0 0
  %920 = vmatpush1.bf16.msra.mxu0 %v488
  %921 = vmatprep.subr.bf16.mxu0 0
  %922 = vmatpush1.bf16.msra.mxu0 %v489
  %923 = vmatprep.mubr.bf16.mxu0 %v808
  %924 = vmatmul.mubr.bf16.gmra.mrb[0].mxu0 %v807
  %v925 = vpop.f32.mrb[0].mxu0
  %v926 = vadd.f32 %v886, %v925
  %v927 = vpop.f32.mrb[0].mxu0
  %v928 = vpop.f32.mrb[0].mxu0
  %v929 = vpop.f32.mrb[0].mxu0
  %930 = vdwg.mxu0
  %931 = vmatprep.subr.bf16.mxu0 0
  %932 = vmatpush1.bf16.msra.mxu0 %v490
  %933 = vmatprep.subr.bf16.mxu0 0
  %934 = vmatpush1.bf16.msra.mxu0 %v491
  %935 = vmatprep.subr.bf16.mxu0 0
  %936 = vmatpush1.bf16.msra.mxu0 %v492
  %937 = vmatprep.subr.bf16.mxu0 0
  %938 = vmatpush1.bf16.msra.mxu0 %v493
  %939 = vmatprep.subr.bf16.mxu0 0
  %940 = vmatpush1.bf16.msra.mxu0 %v494
  %941 = vmatprep.subr.bf16.mxu0 0
  %942 = vmatpush1.bf16.msra.mxu0 %v495
  %943 = vmatprep.subr.bf16.mxu0 0
  %944 = vmatpush1.bf16.msra.mxu0 %v496
  %945 = vmatprep.subr.bf16.mxu0 0
  %946 = vmatpush1.bf16.msra.mxu0 %v497
  %947 = vmatprep.subr.bf16.mxu0 0
  %948 = vmatpush1.bf16.msra.mxu0 %v498
  %949 = vmatprep.subr.bf16.mxu0 0
  %950 = vmatpush1.bf16.msra.mxu0 %v499
  %951 = vmatprep.subr.bf16.mxu0 0
  %952 = vmatpush1.bf16.msra.mxu0 %v500
  %953 = vmatprep.subr.bf16.mxu0 0
  %954 = vmatpush1.bf16.msra.mxu0 %v501
  %955 = vmatprep.subr.bf16.mxu0 0
  %956 = vmatpush1.bf16.msra.mxu0 %v502
  %957 = vmatprep.subr.bf16.mxu0 0
  %958 = vmatpush1.bf16.msra.mxu0 %v503
  %959 = vmatprep.subr.bf16.mxu0 0
  %960 = vmatpush1.bf16.msra.mxu0 %v504
  %961 = vmatprep.subr.bf16.mxu0 0
  %962 = vmatpush1.bf16.msra.mxu0 %v505
  %963 = vmatprep.mubr.bf16.mxu0 %v810
  %964 = vmatmul.mubr.bf16.gmra.mrb[0].mxu0 %v809
  %v965 = vpop.f32.mrb[0].mxu0
  %v966 = vadd.f32 %v926, %v965
  %v967 = vpop.f32.mrb[0].mxu0
  %v968 = vpop.f32.mrb[0].mxu0
  %v969 = vpop.f32.mrb[0].mxu0
  %970 = vdwg.mxu0
  %v971 = vmax.f32 %v966, 0.0
  %v972 = vpack.c.bf16 %v971, %v971
  %v974 = vsel %vm750, %v972, 0
  %976 = vmatprep.subr.bf16.mxu0 0
  %977 = vmatpush1.bf16.msra.mxu0 %v746
  %978 = vmatprep.subr.bf16.mxu0 0
  %979 = vmatpush1.bf16.msra.mxu0 %v747
  %980 = vmatprep.subr.bf16.mxu0 0
  %981 = vmatpush1.bf16.msra.mxu0 0
  %982 = vmatprep.subr.bf16.mxu0 0
  %983 = vmatpush1.bf16.msra.mxu0 0
  %984 = vmatprep.subr.bf16.mxu0 0
  %985 = vmatpush1.bf16.msra.mxu0 0
  %986 = vmatprep.subr.bf16.mxu0 0
  %987 = vmatpush1.bf16.msra.mxu0 0
  %988 = vmatprep.subr.bf16.mxu0 0
  %989 = vmatpush1.bf16.msra.mxu0 0
  %990 = vmatprep.subr.bf16.mxu0 0
  %991 = vmatpush1.bf16.msra.mxu0 0
  %992 = vmatprep.subr.bf16.mxu0 0
  %993 = vmatpush1.bf16.msra.mxu0 0
  %994 = vmatprep.subr.bf16.mxu0 0
  %995 = vmatpush1.bf16.msra.mxu0 0
  %996 = vmatprep.subr.bf16.mxu0 0
  %997 = vmatpush1.bf16.msra.mxu0 0
  %998 = vmatprep.subr.bf16.mxu0 0
  %999 = vmatpush1.bf16.msra.mxu0 0
  %1000 = vmatprep.subr.bf16.mxu0 0
  %1001 = vmatpush1.bf16.msra.mxu0 0
  %1002 = vmatprep.subr.bf16.mxu0 0
  %1003 = vmatpush1.bf16.msra.mxu0 0
  %1004 = vmatprep.subr.bf16.mxu0 0
  %1005 = vmatpush1.bf16.msra.mxu0 0
  %1006 = vmatprep.subr.bf16.mxu0 0
  %1007 = vmatpush1.bf16.msra.mxu0 0
  %1008 = vmatprep.mubr.bf16.mxu0 0
  %1009 = vmatmul.mubr.bf16.gmra.mrb[0].mxu0 %v974
  %v1010 = vpop.f32.mrb[0].mxu0
  %v1011 = vadd.f32 %v736, %v1010
  %v1012 = vpop.f32.mrb[0].mxu0
  %v1013 = vpop.f32.mrb[0].mxu0
  %v1014 = vpop.f32.mrb[0].mxu0
  %1015 = vdwg.mxu0
  %1016 = vst [vmem:[%s8] sm:$0xff] %v1011
  %v1017 = vld [vmem:[%s2] sm:$0xff]
  %v1018 = vld [vmem:[%s2 + $0x8] sm:$0xff]
  %v1019 = vld [vmem:[%s2 + $0x10] sm:$0xff]
  %v1020 = vld [vmem:[%s2 + $0x18] sm:$0xff]
  %v1021 = vld [vmem:[%s2 + $0x20] sm:$0xff]
  %v1022 = vld [vmem:[%s2 + $0x28] sm:$0xff]
  %v1023 = vld [vmem:[%s2 + $0x30] sm:$0xff]
  %v1024 = vld [vmem:[%s2 + $0x38] sm:$0xff]
  %v1025 = vpack.c.bf16 %v1017, %v1017
  %v1026 = vpack.c.bf16 %v1018, %v1018
  %v1027 = vpack.c.bf16 %v1019, %v1019
  %v1028 = vpack.c.bf16 %v1020, %v1020
  %v1029 = vpack.c.bf16 %v1021, %v1021
  %v1030 = vpack.c.bf16 %v1022, %v1022
  %v1031 = vpack.c.bf16 %v1023, %v1023
  %v1032 = vpack.c.bf16 %v1024, %v1024
  %1033 = vmatprep.subr.bf16.mxu0 0
  %1034 = vmatpush1.bf16.msra.mxu0 %v442
  %1035 = vmatprep.subr.bf16.mxu0 0
  %1036 = vmatpush1.bf16.msra.mxu0 %v443
  %1037 = vmatprep.subr.bf16.mxu0 0
  %1038 = vmatpush1.bf16.msra.mxu0 %v444
  %1039 = vmatprep.subr.bf16.mxu0 0
  %1040 = vmatpush1.bf16.msra.mxu0 %v445
  %1041 = vmatprep.subr.bf16.mxu0 0
  %1042 = vmatpush1.bf16.msra.mxu0 %v446
  %1043 = vmatprep.subr.bf16.mxu0 0
  %1044 = vmatpush1.bf16.msra.mxu0 %v447
  %1045 = vmatprep.subr.bf16.mxu0 0
  %1046 = vmatpush1.bf16.msra.mxu0 %v448
  %1047 = vmatprep.subr.bf16.mxu0 0
  %1048 = vmatpush1.bf16.msra.mxu0 %v449
  %1049 = vmatprep.subr.bf16.mxu0 0
  %1050 = vmatpush1.bf16.msra.mxu0 %v450
  %1051 = vmatprep.subr.bf16.mxu0 0
  %1052 = vmatpush1.bf16.msra.mxu0 %v451
  %1053 = vmatprep.subr.bf16.mxu0 0
  %1054 = vmatpush1.bf16.msra.mxu0 %v452
  %1055 = vmatprep.subr.bf16.mxu0 0
  %1056 = vmatpush1.bf16.msra.mxu0 %v453
  %1057 = vmatprep.subr.bf16.mxu0 0
  %1058 = vmatpush1.bf16.msra.mxu0 %v454
  %1059 = vmatprep.subr.bf16.mxu0 0
  %1060 = vmatpush1.bf16.msra.mxu0 %v455
  %1061 = vmatprep.subr.bf16.mxu0 0
  %1062 = vmatpush1.bf16.msra.mxu0 %v456
  %1063 = vmatprep.subr.bf16.mxu0 0
  %1064 = vmatpush1.bf16.msra.mxu0 %v457
  %1065 = vmatprep.mubr.bf16.mxu0 %v1026
  %1066 = vmatmul.mubr.bf16.gmra.mrb[0].mxu0 %v1025
  %v1067 = vpop.f32.mrb[0].mxu0
  %v1068 = vadd.f32 %v184, %v1067
  %v1069 = vpop.f32.mrb[0].mxu0
  %v1070 = vpop.f32.mrb[0].mxu0
  %v1071 = vpop.f32.mrb[0].mxu0
  %1072 = vdwg.mxu0
  %1073 = vmatprep.subr.bf16.mxu0 0
  %1074 = vmatpush1.bf16.msra.mxu0 %v458
  %1075 = vmatprep.subr.bf16.mxu0 0
  %1076 = vmatpush1.bf16.msra.mxu0 %v459
  %1077 = vmatprep.subr.bf16.mxu0 0
  %1078 = vmatpush1.bf16.msra.mxu0 %v460
  %1079 = vmatprep.subr.bf16.mxu0 0
  %1080 = vmatpush1.bf16.msra.mxu0 %v461
  %1081 = vmatprep.subr.bf16.mxu0 0
  %1082 = vmatpush1.bf16.msra.mxu0 %v462
  %1083 = vmatprep.subr.bf16.mxu0 0
  %1084 = vmatpush1.bf16.msra.mxu0 %v463
  %1085 = vmatprep.subr.bf16.mxu0 0
  %1086 = vmatpush1.bf16.msra.mxu0 %v464
  %1087 = vmatprep.subr.bf16.mxu0 0
  %1088 = vmatpush1.bf16.msra.mxu0 %v465
  %1089 = vmatprep.subr.bf16.mxu0 0
  %1090 = vmatpush1.bf16.msra.mxu0 %v466
  %1091 = vmatprep.subr.bf16.mxu0 0
  %1092 = vmatpush1.bf16.msra.mxu0 %v467
  %1093 = vmatprep.subr.bf16.mxu0 0
  %1094 = vmatpush1.bf16.msra.mxu0 %v468
  %1095 = vmatprep.subr.bf16.mxu0 0
  %1096 = vmatpush1.bf16.msra.mxu0 %v469
  %1097 = vmatprep.subr.bf16.mxu0 0
  %1098 = vmatpush1.bf16.msra.mxu0 %v470
  %1099 = vmatprep.subr.bf16.mxu0 0
  %1100 = vmatpush1.bf16.msra.mxu0 %v471
  %1101 = vmatprep.subr.bf16.mxu0 0
  %1102 = vmatpush1.bf16.msra.mxu0 %v472
  %1103 = vmatprep.subr.bf16.mxu0 0
  %1104 = vmatpush1.bf16.msra.mxu0 %v473
  %1105 = vmatprep.mubr.bf16.mxu0 %v1028
  %1106 = vmatmul.mubr.bf16.gmra.mrb[0].mxu0 %v1027
  %v1107 = vpop.f32.mrb[0].mxu0
  %v1108 = vadd.f32 %v1068, %v1107
  %v1109 = vpop.f32.mrb[0].mxu0
  %v1110 = vpop.f32.mrb[0].mxu0
  %v1111 = vpop.f32.mrb[0].mxu0
  %1112 = vdwg.mxu0
  %1113 = vmatprep.subr.bf16.mxu0 0
  %1114 = vmatpush1.bf16.msra.mxu0 %v474
  %1115 = vmatprep.subr.bf16.mxu0 0
  %1116 = vmatpush1.bf16.msra.mxu0 %v475
  %1117 = vmatprep.subr.bf16.mxu0 0
  %1118 = vmatpush1.bf16.msra.mxu0 %v476
  %1119 = vmatprep.subr.bf16.mxu0 0
  %1120 = vmatpush1.bf16.msra.mxu0 %v477
  %1121 = vmatprep.subr.bf16.mxu0 0
  %1122 = vmatpush1.bf16.msra.mxu0 %v478
  %1123 = vmatprep.subr.bf16.mxu0 0
  %1124 = vmatpush1.bf16.msra.mxu0 %v479
  %1125 = vmatprep.subr.bf16.mxu0 0
  %1126 = vmatpush1.bf16.msra.mxu0 %v480
  %1127 = vmatprep.subr.bf16.mxu0 0
  %1128 = vmatpush1.bf16.msra.mxu0 %v481
  %1129 = vmatprep.subr.bf16.mxu0 0
  %1130 = vmatpush1.bf16.msra.mxu0 %v482
  %1131 = vmatprep.subr.bf16.mxu0 0
  %1132 = vmatpush1.bf16.msra.mxu0 %v483
  %1133 = vmatprep.subr.bf16.mxu0 0
  %1134 = vmatpush1.bf16.msra.mxu0 %v484
  %1135 = vmatprep.subr.bf16.mxu0 0
  %1136 = vmatpush1.bf16.msra.mxu0 %v485
  %1137 = vmatprep.subr.bf16.mxu0 0
  %1138 = vmatpush1.bf16.msra.mxu0 %v486
  %1139 = vmatprep.subr.bf16.mxu0 0
  %1140 = vmatpush1.bf16.msra.mxu0 %v487
  %1141 = vmatprep.subr.bf16.mxu0 0
  %1142 = vmatpush1.bf16.msra.mxu0 %v488
  %1143 = vmatprep.subr.bf16.mxu0 0
  %1144 = vmatpush1.bf16.msra.mxu0 %v489
  %1145 = vmatprep.mubr.bf16.mxu0 %v1030
  %1146 = vmatmul.mubr.bf16.gmra.mrb[0].mxu0 %v1029
  %v1147 = vpop.f32.mrb[0].mxu0
  %v1148 = vadd.f32 %v1108, %v1147
  %v1149 = vpop.f32.mrb[0].mxu0
  %v1150 = vpop.f32.mrb[0].mxu0
  %v1151 = vpop.f32.mrb[0].mxu0
  %1152 = vdwg.mxu0
  %1153 = vmatprep.subr.bf16.mxu0 0
  %1154 = vmatpush1.bf16.msra.mxu0 %v490
  %1155 = vmatprep.subr.bf16.mxu0 0
  %1156 = vmatpush1.bf16.msra.mxu0 %v491
  %1157 = vmatprep.subr.bf16.mxu0 0
  %1158 = vmatpush1.bf16.msra.mxu0 %v492
  %1159 = vmatprep.subr.bf16.mxu0 0
  %1160 = vmatpush1.bf16.msra.mxu0 %v493
  %1161 = vmatprep.subr.bf16.mxu0 0
  %1162 = vmatpush1.bf16.msra.mxu0 %v494
  %1163 = vmatprep.subr.bf16.mxu0 0
  %1164 = vmatpush1.bf16.msra.mxu0 %v495
  %1165 = vmatprep.subr.bf16.mxu0 0
  %1166 = vmatpush1.bf16.msra.mxu0 %v496
  %1167 = vmatprep.subr.bf16.mxu0 0
  %1168 = vmatpush1.bf16.msra.mxu0 %v497
  %1169 = vmatprep.subr.bf16.mxu0 0
  %1170 = vmatpush1.bf16.msra.mxu0 %v498
  %1171 = vmatprep.subr.bf16.mxu0 0
  %1172 = vmatpush1.bf16.msra.mxu0 %v499
  %1173 = vmatprep.subr.bf16.mxu0 0
  %1174 = vmatpush1.bf16.msra.mxu0 %v500
  %1175 = vmatprep.subr.bf16.mxu0 0
  %1176 = vmatpush1.bf16.msra.mxu0 %v501
  %1177 = vmatprep.subr.bf16.mxu0 0
  %1178 = vmatpush1.bf16.msra.mxu0 %v502
  %1179 = vmatprep.subr.bf16.mxu0 0
  %1180 = vmatpush1.bf16.msra.mxu0 %v503
  %1181 = vmatprep.subr.bf16.mxu0 0
  %1182 = vmatpush1.bf16.msra.mxu0 %v504
  %1183 = vmatprep.subr.bf16.mxu0 0
  %1184 = vmatpush1.bf16.msra.mxu0 %v505
  %1185 = vmatprep.mubr.bf16.mxu0 %v1032
  %1186 = vmatmul.mubr.bf16.gmra.mrb[0].mxu0 %v1031
  %v1187 = vpop.f32.mrb[0].mxu0
  %v1188 = vadd.f32 %v1148, %v1187
  %v1189 = vpop.f32.mrb[0].mxu0
  %v1190 = vpop.f32.mrb[0].mxu0
  %v1191 = vpop.f32.mrb[0].mxu0
  %1192 = vdwg.mxu0
  %v1193 = vmax.f32 %v1188, 0.0
  %v1194 = vpack.c.bf16 %v1193, %v1193
  %v1196 = vsel %vm750, %v1194, 0
  %1198 = vmatprep.subr.bf16.mxu0 0
  %1199 = vmatpush1.bf16.msra.mxu0 %v746
  %1200 = vmatprep.subr.bf16.mxu0 0
  %1201 = vmatpush1.bf16.msra.mxu0 %v747
  %1202 = vmatprep.subr.bf16.mxu0 0
  %1203 = vmatpush1.bf16.msra.mxu0 0
  %1204 = vmatprep.subr.bf16.mxu0 0
  %1205 = vmatpush1.bf16.msra.mxu0 0
  %1206 = vmatprep.subr.bf16.mxu0 0
  %1207 = vmatpush1.bf16.msra.mxu0 0
  %1208 = vmatprep.subr.bf16.mxu0 0
  %1209 = vmatpush1.bf16.msra.mxu0 0
  %1210 = vmatprep.subr.bf16.mxu0 0
  %1211 = vmatpush1.bf16.msra.mxu0 0
  %1212 = vmatprep.subr.bf16.mxu0 0
  %1213 = vmatpush1.bf16.msra.mxu0 0
  %1214 = vmatprep.subr.bf16.mxu0 0
  %1215 = vmatpush1.bf16.msra.mxu0 0
  %1216 = vmatprep.subr.bf16.mxu0 0
  %1217 = vmatpush1.bf16.msra.mxu0 0
  %1218 = vmatprep.subr.bf16.mxu0 0
  %1219 = vmatpush1.bf16.msra.mxu0 0
  %1220 = vmatprep.subr.bf16.mxu0 0
  %1221 = vmatpush1.bf16.msra.mxu0 0
  %1222 = vmatprep.subr.bf16.mxu0 0
  %1223 = vmatpush1.bf16.msra.mxu0 0
  %1224 = vmatprep.subr.bf16.mxu0 0
  %1225 = vmatpush1.bf16.msra.mxu0 0
  %1226 = vmatprep.subr.bf16.mxu0 0
  %1227 = vmatpush1.bf16.msra.mxu0 0
  %1228 = vmatprep.subr.bf16.mxu0 0
  %1229 = vmatpush1.bf16.msra.mxu0 0
  %1230 = vmatprep.mubr.bf16.mxu0 0
  %1231 = vmatmul.mubr.bf16.gmra.mrb[0].mxu0 %v1196
  %v1232 = vpop.f32.mrb[0].mxu0
  %v1233 = vadd.f32 %v736, %v1232
  %v1234 = vpop.f32.mrb[0].mxu0
  %v1235 = vpop.f32.mrb[0].mxu0
  %v1236 = vpop.f32.mrb[0].mxu0
  %1237 = vdwg.mxu0
  %1238 = vst [vmem:[%s9] sm:$0xff] %v1233
  // Predicated region
  $region30: #{triplet_net_forward.1} parent=0 // pred_check
    _
  $region31: #{triplet_net_forward.1} parent=0 // pred_check_branch
    %1240 = sbr.rel (0) target = $region33
  $region32: #{triplet_net_forward.1} parent=0 // pred_region
    _
  $region33: #{triplet_net_forward.1} parent=0 // pred_fallthru
    _
  // Predicated region
  $region34: #{triplet_net_forward.1} parent=0 // pred_check
    _
  $region35: #{triplet_net_forward.1} parent=0 // pred_check_branch
    %1242 = sbr.rel (0) target = $region37
  $region36: #{triplet_net_forward.1} parent=0 // pred_region
    _
  $region37: #{triplet_net_forward.1} parent=0 // pred_fallthru
    _
  // Predicated region
  $region38: #{triplet_net_forward.1} parent=0 // pred_check
    _
  $region39: #{triplet_net_forward.1} parent=0 // pred_check_branch
    %1244 = sbr.rel (0) target = $region41
  $region40: #{triplet_net_forward.1} parent=0 // pred_region
    _
  $region41: #{triplet_net_forward.1} parent=0 // pred_fallthru
    _
  // Predicated region
  $region42: #{triplet_net_forward.1} parent=0 // pred_check
    _
  $region43: #{triplet_net_forward.1} parent=0 // pred_check_branch
    %1246 = sbr.rel (0) target = $region45
  $region44: #{triplet_net_forward.1} parent=0 // pred_region
    _
  $region45: #{triplet_net_forward.1} parent=0 // pred_fallthru
    _
  // Predicated region
  $region46: #{triplet_net_forward.1} parent=0 // pred_check
    _
  $region47: #{triplet_net_forward.1} parent=0 // pred_check_branch
    %1248 = sbr.rel (0) target = $region49
  $region48: #{triplet_net_forward.1} parent=0 // pred_region
    _
  $region49: #{triplet_net_forward.1} parent=0 // pred_fallthru
    _
  // Predicated region
  $region50: #{triplet_net_forward.1} parent=0 // pred_check
    _
  $region51: #{triplet_net_forward.1} parent=0 // pred_check_branch
    %1250 = sbr.rel (0) target = $region53
  $region52: #{triplet_net_forward.1} parent=0 // pred_region
    _
  $region53: #{triplet_net_forward.1} parent=0 // pred_fallthru
    _

</llo_original>
